<compile_context>
chip_gen: v7x
topology: tpu7x:2x2x1
jax: 0.10.0
libtpu: 0.0.40
codegen_flags: <defaults>
</compile_context>

<pallas_src>
import math

import numpy as np
import jax
import jax.numpy as jnp
from jax.experimental import pallas as pl
from jax.experimental.pallas import tpu as pltpu

_SQRT_HALF = 0.7071067811865476
_SQRT_2_OVER_PI = 0.7978845608028654
_GELU_CUBIC = 0.044715


def _gelu(x):
    # tanh-approx GELU: one EUP transcendental + a short VALU polynomial.  Max abs deviation
    # from torch's exact-erf GELU is ~3e-4, far below the bf16 MXU noise floor used here.
    # TODO(synk): switch back to an erf-based GELU if a tighter-than-bf16 tolerance is required.
    return 0.5 * x * (1.0 + jnp.tanh(_SQRT_2_OVER_PI * (x + _GELU_CUBIC * x * x * x)))


def _decoder_kernel(x_ref, up_ref, dn_ref,
                    w1_ref, b1_ref, w2_ref, b2_ref,
                    wf_ref, bf_ref, o_ref):
    f32, bf16 = jnp.float32, jnp.bfloat16
    Bb, T, C = x_ref.shape
    CP = w1_ref.shape[1] // 3          # lane-aligned per-tap stride (>= C, multiple of 128)
    OUT = o_ref.shape[2] // 4
    OUTP = wf_ref.shape[1] // 3        # lane-aligned per-tap stride (>= OUT)
    M = Bb * T

    # Boundary masks (precomputed in the wrapper): zero the row that wraps across a folded
    # batch element / the conv zero-padding edge.
    up_keep = up_ref[...]              # (M, 1): 0.0 on the LAST time row of each batch element
    dn_keep = dn_ref[...]              # (M, 1): 0.0 on the FIRST time row of each batch element

    # +-1-step shifts as XLU sublane rotations; the wrapped row is masked to zero so the
    # rotation never leaks across batch elements.
    def shift_up(v):                   # y[t] = v[t+1]
        return pltpu.roll(v, M - 1, axis=0) * up_keep

    def shift_down(v):                 # y[t] = v[t-1]
        return pltpu.roll(v, 1, axis=0) * dn_keep

    def mm(a_bf16, w_ref):             # bf16 MXU operands, f32 accumulation
        return jnp.dot(a_bf16, w_ref[...], preferred_element_type=f32)

    x = x_ref[...].reshape(M, C)       # bf16 (pre-cast in the wrapper)

    # ---- ConvTranspose1d #1 (k=3, s=2, p=1, op=1): one fused-tap matmul; the +1-step input
    #      shift is applied to the matmul RESULT (shift(x) @ W == shift(x @ W)). ----
    b1 = b1_ref[...]
    y = mm(x, w1_ref)                                                  # (M, 3*CP) f32
    e1 = _gelu(y[:, CP:CP + C] + b1).astype(bf16)                      # even output phase
    o1 = _gelu(shift_up(y[:, 0:C]) + y[:, 2 * CP:2 * CP + C] + b1).astype(bf16)   # odd phase

    # ---- ConvTranspose1d #2: one fused-tap matmul over the (e1, o1) stack -> 4 phases ----
    b2 = b2_ref[...]
    z = mm(jnp.concatenate([e1, o1], axis=0), w2_ref)                  # (2M, 3*CP) f32
    ze, zo = z[:M], z[M:]
    p0 = _gelu(ze[:, CP:CP + C] + b2).astype(bf16)
    p1 = _gelu(zo[:, 0:C] + ze[:, 2 * CP:2 * CP + C] + b2).astype(bf16)
    p2 = _gelu(zo[:, CP:CP + C] + b2).astype(bf16)
    p3 = _gelu(shift_up(ze[:, 0:C]) + zo[:, 2 * CP:2 * CP + C] + b2).astype(bf16)

    # ---- Conv1d (k=3, s=1, p=1) folded with the Linear: one (4M, C) @ (C, 3*OUTP) matmul ----
    bfuse = bf_ref[...]
    q = mm(jnp.concatenate([p0, p1, p2, p3], axis=0), wf_ref)          # (4M, 3*OUTP) f32
    q0, q1, q2, q3 = q[:M], q[M:2 * M], q[2 * M:3 * M], q[3 * M:]

    def tap(v, k):
        return v[:, k * OUTP:k * OUTP + OUT]

    c0 = shift_down(tap(q3, 0)) + tap(q0, 1) + tap(q1, 2) + bfuse
    c1 = tap(q0, 0) + tap(q1, 1) + tap(q2, 2) + bfuse
    c2 = tap(q1, 0) + tap(q2, 1) + tap(q3, 2) + bfuse
    c3 = tap(q2, 0) + tap(q3, 1) + shift_up(tap(q0, 2)) + bfuse

    # Single lane-packed store: phase r of time t lives at lanes [r*OUT, (r+1)*OUT).
    out = jnp.concatenate([c0, c1, c2, c3], axis=1)                    # (M, 4*OUT) f32
    o_ref[...] = out.reshape(Bb, T, 4 * OUT)


def _round_up(n, m):
    return -(-n // m) * m


def _vmem_budget_bytes():
    try:
        cap = int(pltpu.get_tpu_info().vmem_capacity_bytes)
    except Exception:
        cap = 64 * 1024 * 1024         # conservative fallback: v7x per-TensorCore VMEM
    return (cap * 3) // 4              # leave headroom for compiler scratch / double buffers


def _estimate_step_bytes(block_b, T, C, OUT):
    """Conservative per-grid-step VMEM estimate (weights, double-buffered I/O, intermediates)."""
    CP, OUTP = _round_up(C, 128), _round_up(OUT, 128)
    M = block_b * T
    weights = 4 * (2 * C * 3 * CP + C * 3 * OUTP)                 # bf16 weights, 2 buffers
    io = 2 * (M * C * 2 + M * 4 * OUT * 4)                        # bf16 in / f32 out, 2 buffers
    inter = M * (36 * CP + 48 * OUTP + 12 * C + 32 * OUT)         # y, z, q, bf16 stacks, c/out
    return weights + io + inter + (2 << 20)                       # misc slack


def _pick_block_b(B, T, C, OUT, budget):
    """Largest batch fold that fits the VMEM budget, preferring >= 2 grid steps (megacore)."""
    divisors = [d for d in range(1, B + 1) if B % d == 0]
    fits = [d for d in divisors if _estimate_step_bytes(d, T, C, OUT) <= budget]
    if not fits:
        return 1
    multi = [d for d in fits if B // d >= 2]
    return max(multi) if multi else max(fits)


def upsampling_decoder(x, params, *, block_b=None):
    """x: (B, T, C) float32 -> (B, 4T, OUT) float32."""
    wt1, bt1, wt2, bt2, wc, bc, wl, bl = params
    B, T, C = x.shape
    OUT = wl.shape[0]
    f32, bf16 = jnp.float32, jnp.bfloat16
    CP = _round_up(C, 128)
    OUTP = _round_up(OUT, 128)

    def pad_lanes(w, stride):
        return jnp.pad(w, ((0, 0), (0, stride - w.shape[1])))

    # Fused-tap weights, each tap lane-padded to a 128-aligned stride; bf16 for the MXU.
    # ConvTranspose1d weight is (Cin, Cout, k); Conv1d is (Cout, Cin, k); Linear is (OUT, C).
    w1cat = jnp.concatenate([pad_lanes(wt1[:, :, k], CP) for k in range(3)], axis=1).astype(bf16)
    w2cat = jnp.concatenate([pad_lanes(wt2[:, :, k], CP) for k in range(3)], axis=1).astype(bf16)
    # Conv1d folded into Linear (no nonlinearity in between): tap_k -> Wc_k^T @ Wl^T.
    # Product computed in f32, single bf16 cast.
    wfuse = jnp.concatenate(
        [pad_lanes(wc[:, :, k].T.astype(f32) @ wl.T.astype(f32), OUTP) for k in range(3)],
        axis=1).astype(bf16)
    b1k = bt1.reshape(1, C).astype(f32)
    b2k = bt2.reshape(1, C).astype(f32)
    bfk = (bc.astype(f32) @ wl.T.astype(f32) + bl.astype(f32)).reshape(1, OUT)

    budget = _vmem_budget_bytes()
    if block_b is None:
        block_b = _pick_block_b(B, T, C, OUT, budget)
    assert B % block_b == 0, (B, block_b)
    grid = (B // block_b,)
    M = block_b * T

    est = _estimate_step_bytes(block_b, T, C, OUT)
    vmem_limit = int(min(budget, max(32 * 1024 * 1024, 2 * est)))

    # Shift-boundary masks (see kernel): zero the row that wrapped across a batch element.
    t_idx = np.arange(M) % T
    up_keep = jnp.asarray((t_idx != T - 1).astype(np.float32).reshape(M, 1))
    dn_keep = jnp.asarray((t_idx != 0).astype(np.float32).reshape(M, 1))

    def pinned(shape):
        n = len(shape)
        return pl.BlockSpec(shape, lambda g, n=n: (0,) * n)

    out_lane = pl.pallas_call(
        _decoder_kernel,
        out_shape=jax.ShapeDtypeStruct((B, T, 4 * OUT), jnp.float32),
        grid=grid,
        in_specs=[
            pl.BlockSpec((block_b, T, C), lambda g: (g, 0, 0)),
            pinned((M, 1)), pinned((M, 1)),
            pinned((C, 3 * CP)), pinned((1, C)),
            pinned((C, 3 * CP)), pinned((1, C)),
            pinned((C, 3 * OUTP)), pinned((1, OUT)),
        ],
        # Lane-packed output: phase r of time step t lives at lanes [r*OUT, (r+1)*OUT).
        out_specs=pl.BlockSpec((block_b, T, 4 * OUT), lambda g: (g, 0, 0)),
        compiler_params=pltpu.CompilerParams(
            dimension_semantics=("parallel",),
            vmem_limit_bytes=vmem_limit,
        ),
    )(x.astype(bf16), up_keep, dn_keep, w1cat, b1k, w2cat, b2k, wfuse, bfk)
    # TODO(synk): if even block_b=1 exceeds the v7x (64 MiB) budget for very large T*C, add a
    # T-tiling grid axis with a one-row input halo for the +-1-step shifts.

    # (B, T, 4*OUT) -> (B, 4T, OUT): phase r of time t lands at output index 4t + r.
    return out_lane.reshape(B, 4 * T, OUT)


# ------------------------- plain-JAX reference (exact-erf GELU, f32) -------------------------
def ref_forward(x, params):
    wt1, bt1, wt2, bt2, wc, bc, wl, bl = params

    def gelu(v):
        return 0.5 * v * (1.0 + jax.scipy.special.erf(v * _SQRT_HALF))

    def conv_transpose(h, w, b):  # h: (B, L, Cin), w: (Cin, Cout, 3) -> (B, 2L, Cout)
        B, L, _ = h.shape
        Cout = w.shape[1]
        y = jnp.zeros((B, 2 * L, Cout), jnp.float32) + b[None, None, :]
        for l in range(L):
            for k in range(3):
                i = 2 * l - 1 + k
                if 0 <= i < 2 * L:
                    y = y.at[:, i, :].add(h[:, l, :] @ w[:, :, k])
        return y

    def conv1d(h, w, b):          # h: (B, L, Cin), w: (Cout, Cin, 3) -> (B, L, Cout)
        B, L, _ = h.shape
        hp = jnp.pad(h, ((0, 0), (1, 1), (0, 0)))
        return b[None, None, :] + sum(
            jnp.einsum('blc,dc->bld', hp[:, k:k + L, :], w[:, :, k]) for k in range(3))

    h = gelu(conv_transpose(x, wt1, bt1))
    h = gelu(conv_transpose(h, wt2, bt2))
    h = conv1d(h, wc, bc)
    return h @ wl.T + bl[None, None, :]


if __name__ == "__main__":
    B, T, C, OUT = 2, 8, 32, 16   # batch, seq, in_features, out_features
    key = jax.random.PRNGKey(0)
    ks = jax.random.split(key, 9)
    s_conv = 1.0 / math.sqrt(3 * C)
    wt1 = jax.random.normal(ks[0], (C, C, 3), jnp.float32) * s_conv     # ConvTranspose1d #1
    bt1 = jax.random.normal(ks[1], (C,), jnp.float32) * 0.1
    wt2 = jax.random.normal(ks[2], (C, C, 3), jnp.float32) * s_conv     # ConvTranspose1d #2
    bt2 = jax.random.normal(ks[3], (C,), jnp.float32) * 0.1
    wc = jax.random.normal(ks[4], (C, C, 3), jnp.float32) * s_conv      # Conv1d
    bc = jax.random.normal(ks[5], (C,), jnp.float32) * 0.1
    wl = jax.random.normal(ks[6], (OUT, C), jnp.float32) * (1.0 / math.sqrt(C))  # Linear
    bl = jax.random.normal(ks[7], (OUT,), jnp.float32) * 0.1
    x = jax.random.normal(ks[8], (B, T, C), jnp.float32)

    params = (wt1, bt1, wt2, bt2, wc, bc, wl, bl)

    out = upsampling_decoder(x, params)
    out = jax.block_until_ready(out)
    assert out.shape == (B, 4 * T, OUT), out.shape

    ref = jax.block_until_ready(ref_forward(x, params))
    # bf16 MXU operands + tanh-approx GELU vs the exact f32/erf reference: compare at a
    # bf16-appropriate tolerance (an algebra bug would show up as O(0.1..1) errors).
    np.testing.assert_allclose(np.asarray(out), np.asarray(ref), rtol=3e-2, atol=3e-2)
    print("KERNEL_OK")
</pallas_src>

<mosaic_0001>
module attributes {stable_mosaic.version = 11 : i64} {
  func.func @_decoder_kernel(%arg0: i32, %arg1: memref<1x8x32xbf16, #tpu.memory_space<vmem>>, %arg2: memref<8x1xf32, #tpu.memory_space<vmem>>, %arg3: memref<8x1xf32, #tpu.memory_space<vmem>>, %arg4: memref<32x384xbf16, #tpu.memory_space<vmem>>, %arg5: memref<1x32xf32, #tpu.memory_space<vmem>>, %arg6: memref<32x384xbf16, #tpu.memory_space<vmem>>, %arg7: memref<1x32xf32, #tpu.memory_space<vmem>>, %arg8: memref<32x384xbf16, #tpu.memory_space<vmem>>, %arg9: memref<1x16xf32, #tpu.memory_space<vmem>>, %arg10: memref<1x8x64xf32, #tpu.memory_space<vmem>>) attributes {dimension_semantics = [#tpu.dimension_semantics<parallel>], iteration_bounds = array<i64: 2>, scalar_prefetch = 0 : i64, scratch_operands = 0 : i64, tpu.core_type = #tpu.core_type<tc>, window_params = [{transform_indices = @transform_0, window_bounds = array<i64: 1, 8, 32>}, {pipeline_mode = #tpu.pipeline_mode<synchronous>, transform_indices = @transform_1, window_bounds = array<i64: 8, 1>}, {pipeline_mode = #tpu.pipeline_mode<synchronous>, transform_indices = @transform_2, window_bounds = array<i64: 8, 1>}, {pipeline_mode = #tpu.pipeline_mode<synchronous>, transform_indices = @transform_3, window_bounds = array<i64: 32, 384>}, {pipeline_mode = #tpu.pipeline_mode<synchronous>, transform_indices = @transform_4, window_bounds = array<i64: 1, 32>}, {pipeline_mode = #tpu.pipeline_mode<synchronous>, transform_indices = @transform_5, window_bounds = array<i64: 32, 384>}, {pipeline_mode = #tpu.pipeline_mode<synchronous>, transform_indices = @transform_6, window_bounds = array<i64: 1, 32>}, {pipeline_mode = #tpu.pipeline_mode<synchronous>, transform_indices = @transform_7, window_bounds = array<i64: 32, 384>}, {pipeline_mode = #tpu.pipeline_mode<synchronous>, transform_indices = @transform_8, window_bounds = array<i64: 1, 16>}, {transform_indices = @transform_9, window_bounds = array<i64: 1, 8, 64>}]} {
    %c0 = arith.constant 0 : index
    %c0_0 = arith.constant 0 : index
    %0 = vector.load %arg2[%c0, %c0_0] : memref<8x1xf32, #tpu.memory_space<vmem>>, vector<8x1xf32>
    %c0_1 = arith.constant 0 : index
    %c0_2 = arith.constant 0 : index
    %1 = vector.load %arg3[%c0_1, %c0_2] : memref<8x1xf32, #tpu.memory_space<vmem>>, vector<8x1xf32>
    %c0_3 = arith.constant 0 : index
    %c0_4 = arith.constant 0 : index
    %c0_5 = arith.constant 0 : index
    %2 = vector.load %arg1[%c0_3, %c0_4, %c0_5] : memref<1x8x32xbf16, #tpu.memory_space<vmem>>, vector<1x8x32xbf16>
    %3 = vector.shape_cast %2 : vector<1x8x32xbf16> to vector<8x32xbf16>
    %c0_6 = arith.constant 0 : index
    %c0_7 = arith.constant 0 : index
    %4 = vector.load %arg5[%c0_6, %c0_7] : memref<1x32xf32, #tpu.memory_space<vmem>>, vector<1x32xf32>
    %c0_8 = arith.constant 0 : index
    %c0_9 = arith.constant 0 : index
    %5 = vector.load %arg4[%c0_8, %c0_9] : memref<32x384xbf16, #tpu.memory_space<vmem>>, vector<32x384xbf16>
    %cst = arith.constant dense<0.000000e+00> : vector<8x384xf32>
    %6 = tpu.matmul %3, %5, %cst {dimension_numbers = #tpu.dot_dimension_numbers<[1], [0], [0], [1], [0, 0, 1, 1], [], []>} : vector<8x32xbf16>, vector<32x384xbf16>, vector<8x384xf32> -> vector<8x384xf32>
    %7 = vector.extract_strided_slice %6 {offsets = [0, 128], sizes = [8, 32], strides = [1, 1]} : vector<8x384xf32> to vector<8x32xf32>
    %8 = vector.broadcast %4 : vector<1x32xf32> to vector<8x32xf32>
    %9 = arith.addf %7, %8 : vector<8x32xf32>
    %cst_10 = arith.constant 5.000000e-01 : f32
    %10 = vector.broadcast %cst_10 : f32 to vector<8x32xf32>
    %11 = arith.mulf %10, %9 : vector<8x32xf32>
    %cst_11 = arith.constant 4.471500e-02 : f32
    %12 = vector.broadcast %cst_11 : f32 to vector<8x32xf32>
    %13 = arith.mulf %12, %9 : vector<8x32xf32>
    %14 = arith.mulf %13, %9 : vector<8x32xf32>
    %15 = arith.mulf %14, %9 : vector<8x32xf32>
    %16 = arith.addf %9, %15 : vector<8x32xf32>
    %cst_12 = arith.constant 0.797884583 : f32
    %17 = vector.broadcast %cst_12 : f32 to vector<8x32xf32>
    %18 = arith.mulf %17, %16 : vector<8x32xf32>
    %19 = math.tanh %18 : vector<8x32xf32>
    %cst_13 = arith.constant 1.000000e+00 : f32
    %20 = vector.broadcast %cst_13 : f32 to vector<8x32xf32>
    %21 = arith.addf %20, %19 : vector<8x32xf32>
    %22 = arith.mulf %11, %21 : vector<8x32xf32>
    %23 = arith.truncf %22 : vector<8x32xf32> to vector<8x32xbf16>
    %24 = vector.extract_strided_slice %6 {offsets = [0, 0], sizes = [8, 32], strides = [1, 1]} : vector<8x384xf32> to vector<8x32xf32>
    %c7_i32 = arith.constant 7 : i32
    %25 = tpu.dynamic_rotate %24 by %c7_i32 dim 0 : vector<8x32xf32>, i32 -> vector<8x32xf32>
    %26 = vector.broadcast %0 : vector<8x1xf32> to vector<8x32xf32>
    %27 = arith.mulf %25, %26 : vector<8x32xf32>
    %28 = vector.extract_strided_slice %6 {offsets = [0, 256], sizes = [8, 32], strides = [1, 1]} : vector<8x384xf32> to vector<8x32xf32>
    %29 = arith.addf %27, %28 : vector<8x32xf32>
    %30 = vector.broadcast %4 : vector<1x32xf32> to vector<8x32xf32>
    %31 = arith.addf %29, %30 : vector<8x32xf32>
    %cst_14 = arith.constant 5.000000e-01 : f32
    %32 = vector.broadcast %cst_14 : f32 to vector<8x32xf32>
    %33 = arith.mulf %32, %31 : vector<8x32xf32>
    %cst_15 = arith.constant 4.471500e-02 : f32
    %34 = vector.broadcast %cst_15 : f32 to vector<8x32xf32>
    %35 = arith.mulf %34, %31 : vector<8x32xf32>
    %36 = arith.mulf %35, %31 : vector<8x32xf32>
    %37 = arith.mulf %36, %31 : vector<8x32xf32>
    %38 = arith.addf %31, %37 : vector<8x32xf32>
    %cst_16 = arith.constant 0.797884583 : f32
    %39 = vector.broadcast %cst_16 : f32 to vector<8x32xf32>
    %40 = arith.mulf %39, %38 : vector<8x32xf32>
    %41 = math.tanh %40 : vector<8x32xf32>
    %cst_17 = arith.constant 1.000000e+00 : f32
    %42 = vector.broadcast %cst_17 : f32 to vector<8x32xf32>
    %43 = arith.addf %42, %41 : vector<8x32xf32>
    %44 = arith.mulf %33, %43 : vector<8x32xf32>
    %45 = arith.truncf %44 : vector<8x32xf32> to vector<8x32xbf16>
    %c0_18 = arith.constant 0 : index
    %c0_19 = arith.constant 0 : index
    %46 = vector.load %arg7[%c0_18, %c0_19] : memref<1x32xf32, #tpu.memory_space<vmem>>, vector<1x32xf32>
    %47 = tpu.concatenate %23, %45 in 0 : vector<8x32xbf16>, vector<8x32xbf16> -> vector<16x32xbf16>
    %c0_20 = arith.constant 0 : index
    %c0_21 = arith.constant 0 : index
    %48 = vector.load %arg6[%c0_20, %c0_21] : memref<32x384xbf16, #tpu.memory_space<vmem>>, vector<32x384xbf16>
    %cst_22 = arith.constant dense<0.000000e+00> : vector<16x384xf32>
    %49 = tpu.matmul %47, %48, %cst_22 {dimension_numbers = #tpu.dot_dimension_numbers<[1], [0], [0], [1], [0, 0, 1, 1], [], []>} : vector<16x32xbf16>, vector<32x384xbf16>, vector<16x384xf32> -> vector<16x384xf32>
    %50 = vector.extract_strided_slice %49 {offsets = [0, 0], sizes = [8, 384], strides = [1, 1]} : vector<16x384xf32> to vector<8x384xf32>
    %51 = vector.extract_strided_slice %49 {offsets = [8, 0], sizes = [8, 384], strides = [1, 1]} : vector<16x384xf32> to vector<8x384xf32>
    %52 = vector.extract_strided_slice %50 {offsets = [0, 128], sizes = [8, 32], strides = [1, 1]} : vector<8x384xf32> to vector<8x32xf32>
    %53 = vector.broadcast %46 : vector<1x32xf32> to vector<8x32xf32>
    %54 = arith.addf %52, %53 : vector<8x32xf32>
    %cst_23 = arith.constant 5.000000e-01 : f32
    %55 = vector.broadcast %cst_23 : f32 to vector<8x32xf32>
    %56 = arith.mulf %55, %54 : vector<8x32xf32>
    %cst_24 = arith.constant 4.471500e-02 : f32
    %57 = vector.broadcast %cst_24 : f32 to vector<8x32xf32>
    %58 = arith.mulf %57, %54 : vector<8x32xf32>
    %59 = arith.mulf %58, %54 : vector<8x32xf32>
    %60 = arith.mulf %59, %54 : vector<8x32xf32>
    %61 = arith.addf %54, %60 : vector<8x32xf32>
    %cst_25 = arith.constant 0.797884583 : f32
    %62 = vector.broadcast %cst_25 : f32 to vector<8x32xf32>
    %63 = arith.mulf %62, %61 : vector<8x32xf32>
    %64 = math.tanh %63 : vector<8x32xf32>
    %cst_26 = arith.constant 1.000000e+00 : f32
    %65 = vector.broadcast %cst_26 : f32 to vector<8x32xf32>
    %66 = arith.addf %65, %64 : vector<8x32xf32>
    %67 = arith.mulf %56, %66 : vector<8x32xf32>
    %68 = arith.truncf %67 : vector<8x32xf32> to vector<8x32xbf16>
    %69 = vector.extract_strided_slice %51 {offsets = [0, 0], sizes = [8, 32], strides = [1, 1]} : vector<8x384xf32> to vector<8x32xf32>
    %70 = vector.extract_strided_slice %50 {offsets = [0, 256], sizes = [8, 32], strides = [1, 1]} : vector<8x384xf32> to vector<8x32xf32>
    %71 = arith.addf %69, %70 : vector<8x32xf32>
    %72 = vector.broadcast %46 : vector<1x32xf32> to vector<8x32xf32>
    %73 = arith.addf %71, %72 : vector<8x32xf32>
    %cst_27 = arith.constant 5.000000e-01 : f32
    %74 = vector.broadcast %cst_27 : f32 to vector<8x32xf32>
    %75 = arith.mulf %74, %73 : vector<8x32xf32>
    %cst_28 = arith.constant 4.471500e-02 : f32
    %76 = vector.broadcast %cst_28 : f32 to vector<8x32xf32>
    %77 = arith.mulf %76, %73 : vector<8x32xf32>
    %78 = arith.mulf %77, %73 : vector<8x32xf32>
    %79 = arith.mulf %78, %73 : vector<8x32xf32>
    %80 = arith.addf %73, %79 : vector<8x32xf32>
    %cst_29 = arith.constant 0.797884583 : f32
    %81 = vector.broadcast %cst_29 : f32 to vector<8x32xf32>
    %82 = arith.mulf %81, %80 : vector<8x32xf32>
    %83 = math.tanh %82 : vector<8x32xf32>
    %cst_30 = arith.constant 1.000000e+00 : f32
    %84 = vector.broadcast %cst_30 : f32 to vector<8x32xf32>
    %85 = arith.addf %84, %83 : vector<8x32xf32>
    %86 = arith.mulf %75, %85 : vector<8x32xf32>
    %87 = arith.truncf %86 : vector<8x32xf32> to vector<8x32xbf16>
    %88 = vector.extract_strided_slice %51 {offsets = [0, 128], sizes = [8, 32], strides = [1, 1]} : vector<8x384xf32> to vector<8x32xf32>
    %89 = vector.broadcast %46 : vector<1x32xf32> to vector<8x32xf32>
    %90 = arith.addf %88, %89 : vector<8x32xf32>
    %cst_31 = arith.constant 5.000000e-01 : f32
    %91 = vector.broadcast %cst_31 : f32 to vector<8x32xf32>
    %92 = arith.mulf %91, %90 : vector<8x32xf32>
    %cst_32 = arith.constant 4.471500e-02 : f32
    %93 = vector.broadcast %cst_32 : f32 to vector<8x32xf32>
    %94 = arith.mulf %93, %90 : vector<8x32xf32>
    %95 = arith.mulf %94, %90 : vector<8x32xf32>
    %96 = arith.mulf %95, %90 : vector<8x32xf32>
    %97 = arith.addf %90, %96 : vector<8x32xf32>
    %cst_33 = arith.constant 0.797884583 : f32
    %98 = vector.broadcast %cst_33 : f32 to vector<8x32xf32>
    %99 = arith.mulf %98, %97 : vector<8x32xf32>
    %100 = math.tanh %99 : vector<8x32xf32>
    %cst_34 = arith.constant 1.000000e+00 : f32
    %101 = vector.broadcast %cst_34 : f32 to vector<8x32xf32>
    %102 = arith.addf %101, %100 : vector<8x32xf32>
    %103 = arith.mulf %92, %102 : vector<8x32xf32>
    %104 = arith.truncf %103 : vector<8x32xf32> to vector<8x32xbf16>
    %105 = vector.extract_strided_slice %50 {offsets = [0, 0], sizes = [8, 32], strides = [1, 1]} : vector<8x384xf32> to vector<8x32xf32>
    %c7_i32_35 = arith.constant 7 : i32
    %106 = tpu.dynamic_rotate %105 by %c7_i32_35 dim 0 : vector<8x32xf32>, i32 -> vector<8x32xf32>
    %107 = vector.broadcast %0 : vector<8x1xf32> to vector<8x32xf32>
    %108 = arith.mulf %106, %107 : vector<8x32xf32>
    %109 = vector.extract_strided_slice %51 {offsets = [0, 256], sizes = [8, 32], strides = [1, 1]} : vector<8x384xf32> to vector<8x32xf32>
    %110 = arith.addf %108, %109 : vector<8x32xf32>
    %111 = vector.broadcast %46 : vector<1x32xf32> to vector<8x32xf32>
    %112 = arith.addf %110, %111 : vector<8x32xf32>
    %cst_36 = arith.constant 5.000000e-01 : f32
    %113 = vector.broadcast %cst_36 : f32 to vector<8x32xf32>
    %114 = arith.mulf %113, %112 : vector<8x32xf32>
    %cst_37 = arith.constant 4.471500e-02 : f32
    %115 = vector.broadcast %cst_37 : f32 to vector<8x32xf32>
    %116 = arith.mulf %115, %112 : vector<8x32xf32>
    %117 = arith.mulf %116, %112 : vector<8x32xf32>
    %118 = arith.mulf %117, %112 : vector<8x32xf32>
    %119 = arith.addf %112, %118 : vector<8x32xf32>
    %cst_38 = arith.constant 0.797884583 : f32
    %120 = vector.broadcast %cst_38 : f32 to vector<8x32xf32>
    %121 = arith.mulf %120, %119 : vector<8x32xf32>
    %122 = math.tanh %121 : vector<8x32xf32>
    %cst_39 = arith.constant 1.000000e+00 : f32
    %123 = vector.broadcast %cst_39 : f32 to vector<8x32xf32>
    %124 = arith.addf %123, %122 : vector<8x32xf32>
    %125 = arith.mulf %114, %124 : vector<8x32xf32>
    %126 = arith.truncf %125 : vector<8x32xf32> to vector<8x32xbf16>
    %c0_40 = arith.constant 0 : index
    %c0_41 = arith.constant 0 : index
    %127 = vector.load %arg9[%c0_40, %c0_41] : memref<1x16xf32, #tpu.memory_space<vmem>>, vector<1x16xf32>
    %128 = tpu.concatenate %68, %87, %104, %126 in 0 : vector<8x32xbf16>, vector<8x32xbf16>, vector<8x32xbf16>, vector<8x32xbf16> -> vector<32x32xbf16>
    %c0_42 = arith.constant 0 : index
    %c0_43 = arith.constant 0 : index
    %129 = vector.load %arg8[%c0_42, %c0_43] : memref<32x384xbf16, #tpu.memory_space<vmem>>, vector<32x384xbf16>
    %cst_44 = arith.constant dense<0.000000e+00> : vector<32x384xf32>
    %130 = tpu.matmul %128, %129, %cst_44 {dimension_numbers = #tpu.dot_dimension_numbers<[1], [0], [0], [1], [0, 0, 1, 1], [], []>} : vector<32x32xbf16>, vector<32x384xbf16>, vector<32x384xf32> -> vector<32x384xf32>
    %131 = vector.extract_strided_slice %130 {offsets = [0, 0], sizes = [8, 384], strides = [1, 1]} : vector<32x384xf32> to vector<8x384xf32>
    %132 = vector.extract_strided_slice %130 {offsets = [8, 0], sizes = [8, 384], strides = [1, 1]} : vector<32x384xf32> to vector<8x384xf32>
    %133 = vector.extract_strided_slice %130 {offsets = [16, 0], sizes = [8, 384], strides = [1, 1]} : vector<32x384xf32> to vector<8x384xf32>
    %134 = vector.extract_strided_slice %130 {offsets = [24, 0], sizes = [8, 384], strides = [1, 1]} : vector<32x384xf32> to vector<8x384xf32>
    %135 = vector.extract_strided_slice %134 {offsets = [0, 0], sizes = [8, 16], strides = [1, 1]} : vector<8x384xf32> to vector<8x16xf32>
    %c1_i32 = arith.constant 1 : i32
    %136 = tpu.dynamic_rotate %135 by %c1_i32 dim 0 : vector<8x16xf32>, i32 -> vector<8x16xf32>
    %137 = vector.broadcast %1 : vector<8x1xf32> to vector<8x16xf32>
    %138 = arith.mulf %136, %137 : vector<8x16xf32>
    %139 = vector.extract_strided_slice %131 {offsets = [0, 128], sizes = [8, 16], strides = [1, 1]} : vector<8x384xf32> to vector<8x16xf32>
    %140 = arith.addf %138, %139 : vector<8x16xf32>
    %141 = vector.extract_strided_slice %132 {offsets = [0, 256], sizes = [8, 16], strides = [1, 1]} : vector<8x384xf32> to vector<8x16xf32>
    %142 = arith.addf %140, %141 : vector<8x16xf32>
    %143 = vector.broadcast %127 : vector<1x16xf32> to vector<8x16xf32>
    %144 = arith.addf %142, %143 : vector<8x16xf32>
    %145 = vector.extract_strided_slice %131 {offsets = [0, 0], sizes = [8, 16], strides = [1, 1]} : vector<8x384xf32> to vector<8x16xf32>
    %146 = vector.extract_strided_slice %132 {offsets = [0, 128], sizes = [8, 16], strides = [1, 1]} : vector<8x384xf32> to vector<8x16xf32>
    %147 = arith.addf %145, %146 : vector<8x16xf32>
    %148 = vector.extract_strided_slice %133 {offsets = [0, 256], sizes = [8, 16], strides = [1, 1]} : vector<8x384xf32> to vector<8x16xf32>
    %149 = arith.addf %147, %148 : vector<8x16xf32>
    %150 = vector.broadcast %127 : vector<1x16xf32> to vector<8x16xf32>
    %151 = arith.addf %149, %150 : vector<8x16xf32>
    %152 = vector.extract_strided_slice %132 {offsets = [0, 0], sizes = [8, 16], strides = [1, 1]} : vector<8x384xf32> to vector<8x16xf32>
    %153 = vector.extract_strided_slice %133 {offsets = [0, 128], sizes = [8, 16], strides = [1, 1]} : vector<8x384xf32> to vector<8x16xf32>
    %154 = arith.addf %152, %153 : vector<8x16xf32>
    %155 = vector.extract_strided_slice %134 {offsets = [0, 256], sizes = [8, 16], strides = [1, 1]} : vector<8x384xf32> to vector<8x16xf32>
    %156 = arith.addf %154, %155 : vector<8x16xf32>
    %157 = vector.broadcast %127 : vector<1x16xf32> to vector<8x16xf32>
    %158 = arith.addf %156, %157 : vector<8x16xf32>
    %159 = vector.extract_strided_slice %133 {offsets = [0, 0], sizes = [8, 16], strides = [1, 1]} : vector<8x384xf32> to vector<8x16xf32>
    %160 = vector.extract_strided_slice %134 {offsets = [0, 128], sizes = [8, 16], strides = [1, 1]} : vector<8x384xf32> to vector<8x16xf32>
    %161 = arith.addf %159, %160 : vector<8x16xf32>
    %162 = vector.extract_strided_slice %131 {offsets = [0, 256], sizes = [8, 16], strides = [1, 1]} : vector<8x384xf32> to vector<8x16xf32>
    %c7_i32_45 = arith.constant 7 : i32
    %163 = tpu.dynamic_rotate %162 by %c7_i32_45 dim 0 : vector<8x16xf32>, i32 -> vector<8x16xf32>
    %164 = vector.broadcast %0 : vector<8x1xf32> to vector<8x16xf32>
    %165 = arith.mulf %163, %164 : vector<8x16xf32>
    %166 = arith.addf %161, %165 : vector<8x16xf32>
    %167 = vector.broadcast %127 : vector<1x16xf32> to vector<8x16xf32>
    %168 = arith.addf %166, %167 : vector<8x16xf32>
    %169 = tpu.concatenate %144, %151, %158, %168 in 1 : vector<8x16xf32>, vector<8x16xf32>, vector<8x16xf32>, vector<8x16xf32> -> vector<8x64xf32>
    %170 = vector.shape_cast %169 : vector<8x64xf32> to vector<1x8x64xf32>
    %c0_46 = arith.constant 0 : index
    %c0_47 = arith.constant 0 : index
    %c0_48 = arith.constant 0 : index
    %171 = vector.load %arg10[%c0_46, %c0_47, %c0_48] : memref<1x8x64xf32, #tpu.memory_space<vmem>>, vector<1x8x64xf32>
    tpu.vector_store %arg10[%c0_46, %c0_47, %c0_48], %170 {strides = array<i32>} : memref<1x8x64xf32, #tpu.memory_space<vmem>>, vector<1x8x64xf32>,
    return
  }
  func.func @transform_0(%arg0: i32) -> (i32, i32, i32) {
    %c0_i32 = arith.constant 0 : i32
    %c0_i32_0 = arith.constant 0 : i32
    %c0_i32_1 = arith.constant 0 : i32
    return %arg0, %c0_i32, %c0_i32_0 : i32, i32, i32
  }
  func.func @transform_1(%arg0: i32) -> (i32, i32) {
    %c0_i32 = arith.constant 0 : i32
    %c0_i32_0 = arith.constant 0 : i32
    %c0_i32_1 = arith.constant 0 : i32
    return %c0_i32, %c0_i32_0 : i32, i32
  }
  func.func @transform_2(%arg0: i32) -> (i32, i32) {
    %c0_i32 = arith.constant 0 : i32
    %c0_i32_0 = arith.constant 0 : i32
    %c0_i32_1 = arith.constant 0 : i32
    return %c0_i32, %c0_i32_0 : i32, i32
  }
  func.func @transform_3(%arg0: i32) -> (i32, i32) {
    %c0_i32 = arith.constant 0 : i32
    %c0_i32_0 = arith.constant 0 : i32
    %c0_i32_1 = arith.constant 0 : i32
    return %c0_i32, %c0_i32_0 : i32, i32
  }
  func.func @transform_4(%arg0: i32) -> (i32, i32) {
    %c0_i32 = arith.constant 0 : i32
    %c0_i32_0 = arith.constant 0 : i32
    %c0_i32_1 = arith.constant 0 : i32
    return %c0_i32, %c0_i32_0 : i32, i32
  }
  func.func @transform_5(%arg0: i32) -> (i32, i32) {
    %c0_i32 = arith.constant 0 : i32
    %c0_i32_0 = arith.constant 0 : i32
    %c0_i32_1 = arith.constant 0 : i32
    return %c0_i32, %c0_i32_0 : i32, i32
  }
  func.func @transform_6(%arg0: i32) -> (i32, i32) {
    %c0_i32 = arith.constant 0 : i32
    %c0_i32_0 = arith.constant 0 : i32
    %c0_i32_1 = arith.constant 0 : i32
    return %c0_i32, %c0_i32_0 : i32, i32
  }
  func.func @transform_7(%arg0: i32) -> (i32, i32) {
    %c0_i32 = arith.constant 0 : i32
    %c0_i32_0 = arith.constant 0 : i32
    %c0_i32_1 = arith.constant 0 : i32
    return %c0_i32, %c0_i32_0 : i32, i32
  }
  func.func @transform_8(%arg0: i32) -> (i32, i32) {
    %c0_i32 = arith.constant 0 : i32
    %c0_i32_0 = arith.constant 0 : i32
    %c0_i32_1 = arith.constant 0 : i32
    return %c0_i32, %c0_i32_0 : i32, i32
  }
  func.func @transform_9(%arg0: i32) -> (i32, i32, i32) {
    %c0_i32 = arith.constant 0 : i32
    %c0_i32_0 = arith.constant 0 : i32
    %c0_i32_1 = arith.constant 0 : i32
    return %arg0, %c0_i32, %c0_i32_0 : i32, i32, i32
  }
}

</mosaic_0001>

<llo_original>
// kernel: tpu_custom_call.1
$region0: #{tpu_custom_call.1}
  #allocation0 [shape = 'u32[]', space=smem, size = 0x4, offset = 0x4, fixed_abs, tag = 'smem constant byte address 0x4 - core index']
  #allocation1 [shape = 'u32[144,128]{1,0:T(1,128)}', space=vmem, size = 0x12000, scoped, tag = 'internal scratch']
  %s0 = inlined_call_operand.vmem [shape: bf16[2,8,32], index: 0, kind: input, shape index: {}]
  %s1 = inlined_call_operand.vmem [shape: f32[8,1], index: 1, kind: input, shape index: {}]
  %s2 = inlined_call_operand.vmem [shape: f32[8,1], index: 2, kind: input, shape index: {}]
  %s3 = inlined_call_operand.hbm [shape: bf16[32,384], index: 3, kind: input, shape index: {}]
  %s4 = inlined_call_operand.vmem [shape: f32[1,32], index: 4, kind: input, shape index: {}]
  %s5 = inlined_call_operand.hbm [shape: bf16[32,384], index: 5, kind: input, shape index: {}]
  %s6 = inlined_call_operand.vmem [shape: f32[1,32], index: 6, kind: input, shape index: {}]
  %s7 = inlined_call_operand.hbm [shape: bf16[32,384], index: 7, kind: input, shape index: {}]
  %s8 = inlined_call_operand.vmem [shape: f32[1,16], index: 8, kind: input, shape index: {}]
  %s9 = inlined_call_operand.hbm [shape: f32[2,8,64], index: 9, kind: output, shape index: {}]
  %s10 = sld [smem:[#allocation0]]
  $region81: #{tpu_custom_call.1} parent=0
    _
  %s12 = ssub.s32 1, %s10
  %s13 = scalar_select 0, %s12, %s10
  $region1: #{tpu_custom_call.1} parent=0
    #allocation2 [shape = 'u8[24576]{0}', space=vmem, size = 0x6000, scoped, tag = 'input window, operand 3, single buffered']
    #allocation3 [shape = 's32[2]{0}', space=sflag, size = 0x8, scoped, tag = 'scoped memory for tpu_custom_call.1']
    #allocation4 [shape = 's32[2]{0}', space=sflag, size = 0x8, scoped, tag = 'scoped memory for tpu_custom_call.1']
    #allocation5 [shape = 'u8[24576]{0}', space=vmem, size = 0x6000, scoped, tag = 'input window, operand 5, single buffered']
    #allocation6 [shape = 's32[1]{0}', space=sflag, size = 0x4, scoped, tag = 'scoped memory for tpu_custom_call.1']
    #allocation7 [shape = 'u8[24576]{0}', space=vmem, size = 0x6000, scoped, tag = 'input window, operand 7, single buffered']
    #allocation8 [shape = 'u8[8192]{0}', space=vmem, size = 0x2000, scoped, tag = 'output window, operand 0']
    %14 = vsyncpa [#allocation3], 0
    %15 = vsyncpa [#allocation6], 0
    %16 = vsyncpa [#allocation4], 0
    %s17 = scalar_lea.sflag [#allocation4], 1
    %18 = vsyncpa %s17, 0
    loop: start=0, step=1, limit=4
    $region2: #{tpu_custom_call.1} parent=1 // loop_pre_header
      _
    $region3: #{tpu_custom_call.1} parent=1 // loop_header
      %s20 = sphi 0, %s24
      %p21 = scmp.ge.s32.totalorder %s20, 4
      %s30 = sphi 0, %s32
      %s33 = sphi 0, %s30
      %s34 = sphi 0, %s33
      %s50 = sphi 0, %s34
      %s54 = sphi 0, %s54
      %s56 = sphi 0, %s54
      %s57 = sphi 0, %s56
      %s71 = sphi 0, %s57
      %s75 = sphi 0, %s75
      %s77 = sphi 0, %s75
      %s78 = sphi 0, %s77
      %s92 = sphi 0, %s78
      %s96 = sphi 0, %s96
      %s98 = sphi 0, %s96
      %s99 = sphi 0, %s98
      %s113 = sphi 0, %s99
      %s117 = sphi 0, %s117
      %s119 = sphi 0, %s117
      %s120 = sphi 0, %s119
      %s134 = sphi 0, %s120
      %s138 = sphi 0, %s138
      %s140 = sphi 0, %s138
      %s141 = sphi 0, %s140
      %s155 = sphi 0, %s141
      %s159 = sphi 0, %s159
      %s161 = sphi 0, %s159
      %s162 = sphi 0, %s161
      %s176 = sphi 0, %s162
      %s180 = sphi 0, %s180
      %s182 = sphi 0, %s180
      %s183 = sphi 0, %s182
      %s197 = sphi 0, %s183
      %s201 = sphi 0, %s201
      %s203 = sphi 0, %s201
      %s204 = sphi 0, %s203
      %s218 = sphi 0, %s204
      %s224 = sphi 0, %s226
      %s227 = sphi 0, %s224
      %s228 = sphi 0, %s227
      %s244 = sphi 0, %s228
    $region4: #{tpu_custom_call.1} parent=1 // loop_header_branch
      %23 = sbr.rel (%p21) target = $region8
    $region5: #{tpu_custom_call.1} parent=1 // loop_body
      %s25 = ssub.s32 %s20, 1
      %s26 = ssub.s32 %s20, 2
      %s27 = sadd.s32 %s20, 1
      %s28 = ssub.s32 %s20, %s27
      %p29 = scmp.eq.s32.totalorder %s28, 0
      %s31 = sadd.s32 %s30, 1
      %s32 = scalar_select %p29, %s30, %s31
      %p35 = pneg %p29
      %p36 = scmp.eq.s32.totalorder %s20, 1
      %p37 = por %p35, %p36
      %p38 = scmp.ne.s32.totalorder %s30, %s33
      %p39 = scmp.eq.s32.totalorder %s20, 0
      %p40 = por %p38, %p39
      %p41 = scmp.ne.s32.totalorder %s30, %s33
      %p42 = scmp.eq.s32.totalorder %s25, 1
      %p43 = por %p41, %p42
      %p44 = scmp.ne.s32.totalorder %s33, %s34
      %p45 = scmp.eq.s32.totalorder %s25, 0
      %p46 = por %p44, %p45
      %p47 = scmp.ne.s32.totalorder %s33, %s34
      %p48 = scmp.eq.s32.totalorder %s26, 1
      %p49 = por %p47, %p48
      %p51 = scmp.ne.s32.totalorder %s34, %s50
      %p52 = scmp.eq.s32.totalorder %s26, 0
      %p53 = por %p51, %p52
      %s55 = sadd.s32 %s54, 1
      %p58 = scmp.eq.s32.totalorder %s20, 1
      %p59 = scmp.ne.s32.totalorder %s54, %s56
      %p60 = scmp.eq.s32.totalorder %s20, 0
      %p61 = por %p59, %p60
      %p62 = scmp.ne.s32.totalorder %s54, %s56
      %p63 = scmp.eq.s32.totalorder %s25, 1
      %p64 = por %p62, %p63
      %p65 = scmp.ne.s32.totalorder %s56, %s57
      %p66 = scmp.eq.s32.totalorder %s25, 0
      %p67 = por %p65, %p66
      %p68 = scmp.ne.s32.totalorder %s56, %s57
      %p69 = scmp.eq.s32.totalorder %s26, 1
      %p70 = por %p68, %p69
      %p72 = scmp.ne.s32.totalorder %s57, %s71
      %p73 = scmp.eq.s32.totalorder %s26, 0
      %p74 = por %p72, %p73
      %s76 = sadd.s32 %s75, 1
      %p79 = scmp.eq.s32.totalorder %s20, 1
      %p80 = scmp.ne.s32.totalorder %s75, %s77
      %p81 = scmp.eq.s32.totalorder %s20, 0
      %p82 = por %p80, %p81
      %p83 = scmp.ne.s32.totalorder %s75, %s77
      %p84 = scmp.eq.s32.totalorder %s25, 1
      %p85 = por %p83, %p84
      %p86 = scmp.ne.s32.totalorder %s77, %s78
      %p87 = scmp.eq.s32.totalorder %s25, 0
      %p88 = por %p86, %p87
      %p89 = scmp.ne.s32.totalorder %s77, %s78
      %p90 = scmp.eq.s32.totalorder %s26, 1
      %p91 = por %p89, %p90
      %p93 = scmp.ne.s32.totalorder %s78, %s92
      %p94 = scmp.eq.s32.totalorder %s26, 0
      %p95 = por %p93, %p94
      %s97 = sadd.s32 %s96, 1
      %p100 = scmp.eq.s32.totalorder %s20, 1
      %p101 = scmp.ne.s32.totalorder %s96, %s98
      %p102 = scmp.eq.s32.totalorder %s20, 0
      %p103 = por %p101, %p102
      %p104 = scmp.ne.s32.totalorder %s96, %s98
      %p105 = scmp.eq.s32.totalorder %s25, 1
      %p106 = por %p104, %p105
      %p107 = scmp.ne.s32.totalorder %s98, %s99
      %p108 = scmp.eq.s32.totalorder %s25, 0
      %p109 = por %p107, %p108
      %p110 = scmp.ne.s32.totalorder %s98, %s99
      %p111 = scmp.eq.s32.totalorder %s26, 1
      %p112 = por %p110, %p111
      %p114 = scmp.ne.s32.totalorder %s99, %s113
      %p115 = scmp.eq.s32.totalorder %s26, 0
      %p116 = por %p114, %p115
      %s118 = sadd.s32 %s117, 1
      %p121 = scmp.eq.s32.totalorder %s20, 1
      %p122 = scmp.ne.s32.totalorder %s117, %s119
      %p123 = scmp.eq.s32.totalorder %s20, 0
      %p124 = por %p122, %p123
      %p125 = scmp.ne.s32.totalorder %s117, %s119
      %p126 = scmp.eq.s32.totalorder %s25, 1
      %p127 = por %p125, %p126
      %p128 = scmp.ne.s32.totalorder %s119, %s120
      %p129 = scmp.eq.s32.totalorder %s25, 0
      %p130 = por %p128, %p129
      %p131 = scmp.ne.s32.totalorder %s119, %s120
      %p132 = scmp.eq.s32.totalorder %s26, 1
      %p133 = por %p131, %p132
      %p135 = scmp.ne.s32.totalorder %s120, %s134
      %p136 = scmp.eq.s32.totalorder %s26, 0
      %p137 = por %p135, %p136
      %s139 = sadd.s32 %s138, 1
      %p142 = scmp.eq.s32.totalorder %s20, 1
      %p143 = scmp.ne.s32.totalorder %s138, %s140
      %p144 = scmp.eq.s32.totalorder %s20, 0
      %p145 = por %p143, %p144
      %p146 = scmp.ne.s32.totalorder %s138, %s140
      %p147 = scmp.eq.s32.totalorder %s25, 1
      %p148 = por %p146, %p147
      %p149 = scmp.ne.s32.totalorder %s140, %s141
      %p150 = scmp.eq.s32.totalorder %s25, 0
      %p151 = por %p149, %p150
      %p152 = scmp.ne.s32.totalorder %s140, %s141
      %p153 = scmp.eq.s32.totalorder %s26, 1
      %p154 = por %p152, %p153
      %p156 = scmp.ne.s32.totalorder %s141, %s155
      %p157 = scmp.eq.s32.totalorder %s26, 0
      %p158 = por %p156, %p157
      %s160 = sadd.s32 %s159, 1
      %p163 = scmp.eq.s32.totalorder %s20, 1
      %p164 = scmp.ne.s32.totalorder %s159, %s161
      %p165 = scmp.eq.s32.totalorder %s20, 0
      %p166 = por %p164, %p165
      %p167 = scmp.ne.s32.totalorder %s159, %s161
      %p168 = scmp.eq.s32.totalorder %s25, 1
      %p169 = por %p167, %p168
      %p170 = scmp.ne.s32.totalorder %s161, %s162
      %p171 = scmp.eq.s32.totalorder %s25, 0
      %p172 = por %p170, %p171
      %p173 = scmp.ne.s32.totalorder %s161, %s162
      %p174 = scmp.eq.s32.totalorder %s26, 1
      %p175 = por %p173, %p174
      %p177 = scmp.ne.s32.totalorder %s162, %s176
      %p178 = scmp.eq.s32.totalorder %s26, 0
      %p179 = por %p177, %p178
      %s181 = sadd.s32 %s180, 1
      %p184 = scmp.eq.s32.totalorder %s20, 1
      %p185 = scmp.ne.s32.totalorder %s180, %s182
      %p186 = scmp.eq.s32.totalorder %s20, 0
      %p187 = por %p185, %p186
      %p188 = scmp.ne.s32.totalorder %s180, %s182
      %p189 = scmp.eq.s32.totalorder %s25, 1
      %p190 = por %p188, %p189
      %p191 = scmp.ne.s32.totalorder %s182, %s183
      %p192 = scmp.eq.s32.totalorder %s25, 0
      %p193 = por %p191, %p192
      %p194 = scmp.ne.s32.totalorder %s182, %s183
      %p195 = scmp.eq.s32.totalorder %s26, 1
      %p196 = por %p194, %p195
      %p198 = scmp.ne.s32.totalorder %s183, %s197
      %p199 = scmp.eq.s32.totalorder %s26, 0
      %p200 = por %p198, %p199
      %s202 = sadd.s32 %s201, 1
      %p205 = scmp.eq.s32.totalorder %s20, 1
      %p206 = scmp.ne.s32.totalorder %s201, %s203
      %p207 = scmp.eq.s32.totalorder %s20, 0
      %p208 = por %p206, %p207
      %p209 = scmp.ne.s32.totalorder %s201, %s203
      %p210 = scmp.eq.s32.totalorder %s25, 1
      %p211 = por %p209, %p210
      %p212 = scmp.ne.s32.totalorder %s203, %s204
      %p213 = scmp.eq.s32.totalorder %s25, 0
      %p214 = por %p212, %p213
      %p215 = scmp.ne.s32.totalorder %s203, %s204
      %p216 = scmp.eq.s32.totalorder %s26, 1
      %p217 = por %p215, %p216
      %p219 = scmp.ne.s32.totalorder %s204, %s218
      %p220 = scmp.eq.s32.totalorder %s26, 0
      %p221 = por %p219, %p220
      %s222 = ssub.s32 %s20, %s27
      %p223 = scmp.eq.s32.totalorder %s222, 0
      %s225 = sadd.s32 %s224, 1
      %s226 = scalar_select %p223, %s224, %s225
      %p229 = pneg %p223
      %p230 = scmp.eq.s32.totalorder %s20, 1
      %p231 = por %p229, %p230
      %p232 = scmp.ne.s32.totalorder %s224, %s227
      %p233 = scmp.eq.s32.totalorder %s20, 0
      %p234 = por %p232, %p233
      %p235 = scmp.ne.s32.totalorder %s224, %s227
      %p236 = scmp.eq.s32.totalorder %s25, 1
      %p237 = por %p235, %p236
      %p238 = scmp.ne.s32.totalorder %s227, %s228
      %p239 = scmp.eq.s32.totalorder %s25, 0
      %p240 = por %p238, %p239
      %p241 = scmp.ne.s32.totalorder %s227, %s228
      %p242 = scmp.eq.s32.totalorder %s26, 1
      %p243 = por %p241, %p242
      %p245 = scmp.ne.s32.totalorder %s228, %s244
      %p246 = scmp.eq.s32.totalorder %s26, 0
      %p247 = por %p245, %p246
      %p248 = scmp.le.s32.totalorder 1, %s20
      %p249 = scmp.lt.s32.totalorder %s20, 3
      %p250 = pnand %p248, %p249
      %p251 = pneg %p250
      // Predicated region
      $region9: #{tpu_custom_call.1} parent=5 // pred_check
        _
      $region10: #{tpu_custom_call.1} parent=5 // pred_check_branch
        %253 = sbr.rel (%p250) target = $region12
      $region11: #{tpu_custom_call.1} parent=5 // pred_region
        %s254 = ssub.s32 %s20, 1
        // Predicated region
        $region13: #{tpu_custom_call.1} parent=11 // pred_check
          %p255 = pneg %p67
        $region14: #{tpu_custom_call.1} parent=11 // pred_check_branch
          %257 = sbr.rel (%p255) target = $region16
        $region15: #{tpu_custom_call.1} parent=11 // pred_region
          _
        $region16: #{tpu_custom_call.1} parent=11 // pred_fallthru
          _
        // Predicated region
        $region17: #{tpu_custom_call.1} parent=11 // pred_check
          %p258 = pneg %p88
        $region18: #{tpu_custom_call.1} parent=11 // pred_check_branch
          %260 = sbr.rel (%p258) target = $region20
        $region19: #{tpu_custom_call.1} parent=11 // pred_region
          _
        $region20: #{tpu_custom_call.1} parent=11 // pred_fallthru
          _
        // Predicated region
        $region21: #{tpu_custom_call.1} parent=11 // pred_check
          %p261 = pneg %p109
        $region22: #{tpu_custom_call.1} parent=11 // pred_check_branch
          %263 = sbr.rel (%p261) target = $region24
        $region23: #{tpu_custom_call.1} parent=11 // pred_region
          %s265 = ssub.s32 768, 768
          %266 = vsyncadd [#allocation3], %s265
          %s267 = sshll.u32 [#allocation2], 4
          %s268 = int_to_ptr.vmem [resolvable:$true] %s267
          %273 = dma.hbm_to_vmem [thread:$0]  %s3, 768, %s268, [#allocation3], 192, 192, 12
        $region24: #{tpu_custom_call.1} parent=11 // pred_fallthru
          _
        // Predicated region
        $region25: #{tpu_custom_call.1} parent=11 // pred_check
          %p274 = pneg %p130
        $region26: #{tpu_custom_call.1} parent=11 // pred_check_branch
          %276 = sbr.rel (%p274) target = $region28
        $region27: #{tpu_custom_call.1} parent=11 // pred_region
          _
        $region28: #{tpu_custom_call.1} parent=11 // pred_fallthru
          _
        // Predicated region
        $region29: #{tpu_custom_call.1} parent=11 // pred_check
          %p277 = pneg %p151
        $region30: #{tpu_custom_call.1} parent=11 // pred_check_branch
          %279 = sbr.rel (%p277) target = $region32
        $region31: #{tpu_custom_call.1} parent=11 // pred_region
          %s281 = ssub.s32 768, 768
          %282 = vsyncadd [#allocation6], %s281
          %s283 = sshll.u32 [#allocation5], 4
          %s284 = int_to_ptr.vmem [resolvable:$true] %s283
          %289 = dma.hbm_to_vmem [thread:$0]  %s5, 768, %s284, [#allocation6], 192, 192, 12
        $region32: #{tpu_custom_call.1} parent=11 // pred_fallthru
          _
        // Predicated region
        $region33: #{tpu_custom_call.1} parent=11 // pred_check
          %p290 = pneg %p172
        $region34: #{tpu_custom_call.1} parent=11 // pred_check_branch
          %292 = sbr.rel (%p290) target = $region36
        $region35: #{tpu_custom_call.1} parent=11 // pred_region
          _
        $region36: #{tpu_custom_call.1} parent=11 // pred_fallthru
          _
        // Predicated region
        $region37: #{tpu_custom_call.1} parent=11 // pred_check
          %p293 = pneg %p193
        $region38: #{tpu_custom_call.1} parent=11 // pred_check_branch
          %295 = sbr.rel (%p293) target = $region40
        $region39: #{tpu_custom_call.1} parent=11 // pred_region
          %s297 = ssub.s32 768, 768
          %298 = vsyncadd [#allocation6], %s297
          %s299 = sshll.u32 [#allocation7], 4
          %s300 = int_to_ptr.vmem [resolvable:$true] %s299
          %305 = dma.hbm_to_vmem [thread:$0]  %s7, 768, %s300, [#allocation6], 192, 192, 12
        $region40: #{tpu_custom_call.1} parent=11 // pred_fallthru
          _
        // Predicated region
        $region41: #{tpu_custom_call.1} parent=11 // pred_check
          %p306 = pneg %p214
        $region42: #{tpu_custom_call.1} parent=11 // pred_check_branch
          %308 = sbr.rel (%p306) target = $region44
        $region43: #{tpu_custom_call.1} parent=11 // pred_region
          _
        $region44: #{tpu_custom_call.1} parent=11 // pred_fallthru
          _
      $region12: #{tpu_custom_call.1} parent=5 // pred_fallthru
        _
      %p309 = scmp.lt.s32.totalorder %s20, 2
      // Predicated region
      $region45: #{tpu_custom_call.1} parent=5 // pred_check
        %p310 = pneg %p309
      $region46: #{tpu_custom_call.1} parent=5 // pred_check_branch
        %312 = sbr.rel (%p310) target = $region48
      $region47: #{tpu_custom_call.1} parent=5 // pred_region
        // Predicated region
        $region49: #{tpu_custom_call.1} parent=47 // pred_check
          %p313 = pneg %p40
        $region50: #{tpu_custom_call.1} parent=47 // pred_check_branch
          %315 = sbr.rel (%p313) target = $region52
        $region51: #{tpu_custom_call.1} parent=47 // pred_region
          %p316 = scmp.lt.s32.totalorder %s20, 1
          %s317 = scalar_select %p316, %s20, 1
          %s318 = smul.addr %s317, 4
          %s319 = scalar_lea.vmem %s0, %s318
        $region52: #{tpu_custom_call.1} parent=47 // pred_fallthru
          _
      $region48: #{tpu_custom_call.1} parent=5 // pred_fallthru
        _
      %p320 = scmp.le.s32.totalorder 1, %s20
      %p321 = scmp.lt.s32.totalorder %s20, 3
      %p322 = pnand %p320, %p321
      %p323 = pneg %p322
      // Predicated region
      $region53: #{tpu_custom_call.1} parent=5 // pred_check
        _
      $region54: #{tpu_custom_call.1} parent=5 // pred_check_branch
        %325 = sbr.rel (%p322) target = $region56
      $region55: #{tpu_custom_call.1} parent=5 // pred_region
        %s326 = ssub.s32 %s20, 1
        // Predicated region
        $region57: #{tpu_custom_call.1} parent=55 // pred_check
          %p327 = pneg %p109
        $region58: #{tpu_custom_call.1} parent=55 // pred_check_branch
          %329 = sbr.rel (%p327) target = $region60
        $region59: #{tpu_custom_call.1} parent=55 // pred_region
          %330 = dma.done [#allocation3], 768
        $region60: #{tpu_custom_call.1} parent=55 // pred_fallthru
          _
        // Predicated region
        $region61: #{tpu_custom_call.1} parent=55 // pred_check
          %p331 = pneg %p151
        $region62: #{tpu_custom_call.1} parent=55 // pred_check_branch
          %333 = sbr.rel (%p331) target = $region64
        $region63: #{tpu_custom_call.1} parent=55 // pred_region
          %334 = dma.done [#allocation6], 768
        $region64: #{tpu_custom_call.1} parent=55 // pred_fallthru
          _
        // Predicated region
        $region65: #{tpu_custom_call.1} parent=55 // pred_check
          %p335 = pneg %p193
        $region66: #{tpu_custom_call.1} parent=55 // pred_check_branch
          %337 = sbr.rel (%p335) target = $region68
        $region67: #{tpu_custom_call.1} parent=55 // pred_region
          %338 = dma.done [#allocation6], 768
        $region68: #{tpu_custom_call.1} parent=55 // pred_fallthru
          _
        %p339 = scmp.lt.s32.totalorder %s25, 1
        %s340 = scalar_select %p339, %s25, 1
        %s341 = smul.addr %s340, 4
        %s342 = scalar_lea.vmem %s0, %s341
        %p343 = pneg %p46
        %p344 = pneg %p43
        %p345 = pneg %p67
        %p346 = pneg %p64
        %p347 = pneg %p88
        %p348 = pneg %p85
        %p349 = pneg %p109
        %p350 = pneg %p106
        %p351 = pneg %p130
        %p352 = pneg %p127
        %p353 = pneg %p151
        %p354 = pneg %p148
        %p355 = pneg %p172
        %p356 = pneg %p169
        %p357 = pneg %p193
        %p358 = pneg %p190
        %p359 = pneg %p214
        %p360 = pneg %p211
        %p361 = pneg %p240
        %p362 = pneg %p237
        %s363 = sand.u32 %s227, 1
        %s364 = scalar_lea.sflag [#allocation4], %s363
        %s365 = sand.u32 %s227, 1
        %s366 = smul.addr %s365, 8
        %s367 = scalar_lea.vmem [#allocation8], %s366
        %p368 = scmp.lt.s32.totalorder %s25, 1
        %s369 = scalar_select %p368, %s25, 1
        %s370 = smul.addr %s369, 4
        %s371 = scalar_lea.vmem %s0, %s370
        %v373 = vld [vmem:[%s1] sm:$0xff]
        %v374 = vld [vmem:[%s2] sm:$0xff]
        %v375 = vld [vmem:[%s371] sm:$0xf]
        %v376 = vld [vmem:[%s4] sm:$0x1]
        %v377 = vld [vmem:[#allocation2] sm:$0xff]
        %v378 = vld [vmem:[#allocation2 + $0x8] sm:$0xf]
        %v379 = vld [vmem:[#allocation2 + $0xc] sm:$0xff]
        %v380 = vld [vmem:[#allocation2 + $0x14] sm:$0xf]
        %v381 = vld [vmem:[#allocation2 + $0x18] sm:$0xff]
        %v382 = vld [vmem:[#allocation2 + $0x20] sm:$0xf]
        %v383 = vld [vmem:[#allocation2 + $0x24] sm:$0xff]
        %v384 = vld [vmem:[#allocation2 + $0x2c] sm:$0xf]
        %v393 = vunpack.c.l.b16 %v377
        %v394 = vunpack.c.h.b16 %v377
        %v395 = vunpack.c.l.b16 %v378
        %v396 = vunpack.c.l.b16 %v379
        %v397 = vunpack.c.h.b16 %v379
        %v398 = vunpack.c.l.b16 %v380
        %v399 = vunpack.c.l.b16 %v381
        %v400 = vunpack.c.h.b16 %v381
        %v401 = vunpack.c.l.b16 %v382
        %v402 = vunpack.c.l.b16 %v383
        %v403 = vunpack.c.h.b16 %v383
        %v404 = vunpack.c.l.b16 %v384
        %v405 = vpack.c.b16 %v396, %v393
        %v406 = vpack.c.b16 %v397, %v394
        %v407 = vpack.c.b16 %v398, %v395
        %v408 = vpack.c.b16 %v402, %v399
        %v409 = vpack.c.b16 %v403, %v400
        %v410 = vpack.c.b16 %v404, %v401
        %vm417 = vcmask 261120
        %v419 = vsel %vm417, %v375, 0
        %421 = vmatprep.subr.bf16.mxu0 %v406
        %422 = vmatpush1.bf16.msra.mxu0 %v405
        %423 = vmatprep.subr.bf16.mxu0 %v409
        %424 = vmatpush1.bf16.msra.mxu0 %v408
        %425 = vmatprep.subr.bf16.mxu0 0
        %426 = vmatpush1.bf16.msra.mxu0 0
        %427 = vmatprep.subr.bf16.mxu0 0
        %428 = vmatpush1.bf16.msra.mxu0 0
        %429 = vmatprep.subr.bf16.mxu0 0
        %430 = vmatpush1.bf16.msra.mxu0 0
        %431 = vmatprep.subr.bf16.mxu0 0
        %432 = vmatpush1.bf16.msra.mxu0 0
        %433 = vmatprep.subr.bf16.mxu0 0
        %434 = vmatpush1.bf16.msra.mxu0 0
        %435 = vmatprep.subr.bf16.mxu0 0
        %436 = vmatpush1.bf16.msra.mxu0 0
        %437 = vmatprep.subr.bf16.mxu0 0
        %438 = vmatpush1.bf16.msra.mxu0 0
        %439 = vmatprep.subr.bf16.mxu0 0
        %440 = vmatpush1.bf16.msra.mxu0 0
        %441 = vmatprep.subr.bf16.mxu0 0
        %442 = vmatpush1.bf16.msra.mxu0 0
        %443 = vmatprep.subr.bf16.mxu0 0
        %444 = vmatpush1.bf16.msra.mxu0 0
        %445 = vmatprep.subr.bf16.mxu0 0
        %446 = vmatpush1.bf16.msra.mxu0 0
        %447 = vmatprep.subr.bf16.mxu0 0
        %448 = vmatpush1.bf16.msra.mxu0 0
        %449 = vmatprep.subr.bf16.mxu0 0
        %450 = vmatpush1.bf16.msra.mxu0 0
        %451 = vmatprep.subr.bf16.mxu0 0
        %452 = vmatpush1.bf16.msra.mxu0 0
        %453 = vmatprep.mubr.bf16.mxu0 0
        %454 = vmatmul.mubr.bf16.gmra.mrb[0].mxu0 %v419
        %v455 = vpop.f32.mrb[0].mxu0
        %v456 = vadd.f32 0.0, %v455
        %v457 = vpop.f32.mrb[0].mxu0
        %v458 = vadd.f32 0.0, %v457
        %v459 = vpop.f32.mrb[0].mxu0
        %v460 = vpop.f32.mrb[0].mxu0
        %461 = vdwg.mxu0
        %462 = vmatprep.subr.bf16.mxu0 0
        %463 = vmatpush1.bf16.msra.mxu0 %v407
        %464 = vmatprep.subr.bf16.mxu0 0
        %465 = vmatpush1.bf16.msra.mxu0 %v410
        %466 = vmatprep.subr.bf16.mxu0 0
        %467 = vmatpush1.bf16.msra.mxu0 0
        %468 = vmatprep.subr.bf16.mxu0 0
        %469 = vmatpush1.bf16.msra.mxu0 0
        %470 = vmatprep.subr.bf16.mxu0 0
        %471 = vmatpush1.bf16.msra.mxu0 0
        %472 = vmatprep.subr.bf16.mxu0 0
        %473 = vmatpush1.bf16.msra.mxu0 0
        %474 = vmatprep.subr.bf16.mxu0 0
        %475 = vmatpush1.bf16.msra.mxu0 0
        %476 = vmatprep.subr.bf16.mxu0 0
        %477 = vmatpush1.bf16.msra.mxu0 0
        %478 = vmatprep.subr.bf16.mxu0 0
        %479 = vmatpush1.bf16.msra.mxu0 0
        %480 = vmatprep.subr.bf16.mxu0 0
        %481 = vmatpush1.bf16.msra.mxu0 0
        %482 = vmatprep.subr.bf16.mxu0 0
        %483 = vmatpush1.bf16.msra.mxu0 0
        %484 = vmatprep.subr.bf16.mxu0 0
        %485 = vmatpush1.bf16.msra.mxu0 0
        %486 = vmatprep.subr.bf16.mxu0 0
        %487 = vmatpush1.bf16.msra.mxu0 0
        %488 = vmatprep.subr.bf16.mxu0 0
        %489 = vmatpush1.bf16.msra.mxu0 0
        %490 = vmatprep.subr.bf16.mxu0 0
        %491 = vmatpush1.bf16.msra.mxu0 0
        %492 = vmatprep.subr.bf16.mxu0 0
        %493 = vmatpush1.bf16.msra.mxu0 0
        %494 = vmatprep.mubr.bf16.mxu0 0
        %495 = vmatmul.mubr.bf16.gmra.mrb[0].mxu0 %v419
        %v496 = vpop.f32.mrb[0].mxu0
        %v497 = vadd.f32 0.0, %v496
        %v498 = vpop.f32.mrb[0].mxu0
        %v499 = vpop.f32.mrb[0].mxu0
        %v500 = vpop.f32.mrb[0].mxu0
        %501 = vdwg.mxu0
        %v503 = vlaneseq
        %v504 = vshrl.u32 %v503, 7
        %v505 = vsub.s32 0, %v504
        %v506 = vrot.slane %v376, %v505
        %v508 = vadd.f32 %v458, %v506
        %v509 = vmul.f32 %v508, 0.5
        %v510 = vmul.f32 %v508, 0.044715
        %v511 = vmul.f32 %v510, %v508
        %v512 = vmul.f32 %v511, %v508
        %v513 = vadd.f32 %v508, %v512
        %v514 = vmul.f32 %v513, 0.7978846
        %v515 = vtanh.pop %v514
        %v516 = vadd.f32 %v515, 1.0
        %v517 = vmul.f32 %v509, %v516
        %v518 = vpack.c.bf16 %v517, %v517
        %v519 = vrot.slane %v456, 1
        %521 = vset.pattern.permute.xlu0 0
        %522 = vperm.xlu0 %521, %v373
        %v523 = vpop.permute.xlu0 %522
        %v525 = vmul.f32 %v519, %v523
        %v526 = vadd.f32 %v525, %v497
        %v527 = vadd.f32 %v526, %v506
        %v528 = vmul.f32 %v527, 0.5
        %v529 = vmul.f32 %v527, 0.044715
        %v530 = vmul.f32 %v529, %v527
        %v531 = vmul.f32 %v530, %v527
        %v532 = vadd.f32 %v527, %v531
        %v533 = vmul.f32 %v532, 0.7978846
        %v534 = vtanh.pop %v533
        %v535 = vadd.f32 %v534, 1.0
        %v536 = vmul.f32 %v528, %v535
        %v537 = vpack.c.bf16 %v536, %v536
        %v538 = vld [vmem:[%s6] sm:$0x1]
        %v540 = vrot.slane %v537, 4
        %vm541 = vcmask 1043456
        %v544 = vsel %vm541, %v518, %v540
        %v545 = vld [vmem:[#allocation5] sm:$0xff]
        %v546 = vld [vmem:[#allocation5 + $0x8] sm:$0xf]
        %v547 = vld [vmem:[#allocation5 + $0xc] sm:$0xff]
        %v548 = vld [vmem:[#allocation5 + $0x14] sm:$0xf]
        %v549 = vld [vmem:[#allocation5 + $0x18] sm:$0xff]
        %v550 = vld [vmem:[#allocation5 + $0x20] sm:$0xf]
        %v551 = vld [vmem:[#allocation5 + $0x24] sm:$0xff]
        %v552 = vld [vmem:[#allocation5 + $0x2c] sm:$0xf]
        %v561 = vunpack.c.l.b16 %v545
        %v562 = vunpack.c.h.b16 %v545
        %v563 = vunpack.c.l.b16 %v546
        %v564 = vunpack.c.l.b16 %v547
        %v565 = vunpack.c.h.b16 %v547
        %v566 = vunpack.c.l.b16 %v548
        %v567 = vunpack.c.l.b16 %v549
        %v568 = vunpack.c.h.b16 %v549
        %v569 = vunpack.c.l.b16 %v550
        %v570 = vunpack.c.l.b16 %v551
        %v571 = vunpack.c.h.b16 %v551
        %v572 = vunpack.c.l.b16 %v552
        %v573 = vpack.c.b16 %v564, %v561
        %v574 = vpack.c.b16 %v565, %v562
        %v575 = vpack.c.b16 %v566, %v563
        %v576 = vpack.c.b16 %v570, %v567
        %v577 = vpack.c.b16 %v571, %v568
        %v578 = vpack.c.b16 %v572, %v569
        %v585 = vsel %vm417, %v544, 0
        %587 = vmatprep.subr.bf16.mxu0 %v574
        %588 = vmatpush1.bf16.msra.mxu0 %v573
        %589 = vmatprep.subr.bf16.mxu0 %v577
        %590 = vmatpush1.bf16.msra.mxu0 %v576
        %591 = vmatprep.subr.bf16.mxu0 0
        %592 = vmatpush1.bf16.msra.mxu0 0
        %593 = vmatprep.subr.bf16.mxu0 0
        %594 = vmatpush1.bf16.msra.mxu0 0
        %595 = vmatprep.subr.bf16.mxu0 0
        %596 = vmatpush1.bf16.msra.mxu0 0
        %597 = vmatprep.subr.bf16.mxu0 0
        %598 = vmatpush1.bf16.msra.mxu0 0
        %599 = vmatprep.subr.bf16.mxu0 0
        %600 = vmatpush1.bf16.msra.mxu0 0
        %601 = vmatprep.subr.bf16.mxu0 0
        %602 = vmatpush1.bf16.msra.mxu0 0
        %603 = vmatprep.subr.bf16.mxu0 0
        %604 = vmatpush1.bf16.msra.mxu0 0
        %605 = vmatprep.subr.bf16.mxu0 0
        %606 = vmatpush1.bf16.msra.mxu0 0
        %607 = vmatprep.subr.bf16.mxu0 0
        %608 = vmatpush1.bf16.msra.mxu0 0
        %609 = vmatprep.subr.bf16.mxu0 0
        %610 = vmatpush1.bf16.msra.mxu0 0
        %611 = vmatprep.subr.bf16.mxu0 0
        %612 = vmatpush1.bf16.msra.mxu0 0
        %613 = vmatprep.subr.bf16.mxu0 0
        %614 = vmatpush1.bf16.msra.mxu0 0
        %615 = vmatprep.subr.bf16.mxu0 0
        %616 = vmatpush1.bf16.msra.mxu0 0
        %617 = vmatprep.subr.bf16.mxu0 0
        %618 = vmatpush1.bf16.msra.mxu0 0
        %619 = vmatprep.mubr.bf16.mxu0 0
        %620 = vmatmul.mubr.bf16.gmra.mrb[0].mxu0 %v585
        %v621 = vpop.f32.mrb[0].mxu0
        %v622 = vadd.f32 0.0, %v621
        %v623 = vpop.f32.mrb[0].mxu0
        %v624 = vadd.f32 0.0, %v623
        %v625 = vpop.f32.mrb[0].mxu0
        %v626 = vadd.f32 0.0, %v625
        %v627 = vpop.f32.mrb[0].mxu0
        %v628 = vadd.f32 0.0, %v627
        %629 = vdwg.mxu0
        %630 = vmatprep.subr.bf16.mxu0 0
        %631 = vmatpush1.bf16.msra.mxu0 %v575
        %632 = vmatprep.subr.bf16.mxu0 0
        %633 = vmatpush1.bf16.msra.mxu0 %v578
        %634 = vmatprep.subr.bf16.mxu0 0
        %635 = vmatpush1.bf16.msra.mxu0 0
        %636 = vmatprep.subr.bf16.mxu0 0
        %637 = vmatpush1.bf16.msra.mxu0 0
        %638 = vmatprep.subr.bf16.mxu0 0
        %639 = vmatpush1.bf16.msra.mxu0 0
        %640 = vmatprep.subr.bf16.mxu0 0
        %641 = vmatpush1.bf16.msra.mxu0 0
        %642 = vmatprep.subr.bf16.mxu0 0
        %643 = vmatpush1.bf16.msra.mxu0 0
        %644 = vmatprep.subr.bf16.mxu0 0
        %645 = vmatpush1.bf16.msra.mxu0 0
        %646 = vmatprep.subr.bf16.mxu0 0
        %647 = vmatpush1.bf16.msra.mxu0 0
        %648 = vmatprep.subr.bf16.mxu0 0
        %649 = vmatpush1.bf16.msra.mxu0 0
        %650 = vmatprep.subr.bf16.mxu0 0
        %651 = vmatpush1.bf16.msra.mxu0 0
        %652 = vmatprep.subr.bf16.mxu0 0
        %653 = vmatpush1.bf16.msra.mxu0 0
        %654 = vmatprep.subr.bf16.mxu0 0
        %655 = vmatpush1.bf16.msra.mxu0 0
        %656 = vmatprep.subr.bf16.mxu0 0
        %657 = vmatpush1.bf16.msra.mxu0 0
        %658 = vmatprep.subr.bf16.mxu0 0
        %659 = vmatpush1.bf16.msra.mxu0 0
        %660 = vmatprep.subr.bf16.mxu0 0
        %661 = vmatpush1.bf16.msra.mxu0 0
        %662 = vmatprep.mubr.bf16.mxu0 0
        %663 = vmatmul.mubr.bf16.gmra.mrb[0].mxu0 %v585
        %v664 = vpop.f32.mrb[0].mxu0
        %v665 = vadd.f32 0.0, %v664
        %v666 = vpop.f32.mrb[0].mxu0
        %v667 = vpop.f32.mrb[0].mxu0
        %v668 = vadd.f32 0.0, %v667
        %v669 = vpop.f32.mrb[0].mxu0
        %670 = vdwg.mxu0
        %v672 = vlaneseq
        %v673 = vshrl.u32 %v672, 7
        %v674 = vsub.s32 0, %v673
        %v675 = vrot.slane %v538, %v674
        %v677 = vadd.f32 %v624, %v675
        %v678 = vmul.f32 %v677, 0.5
        %v679 = vmul.f32 %v677, 0.044715
        %v680 = vmul.f32 %v679, %v677
        %v681 = vmul.f32 %v680, %v677
        %v682 = vadd.f32 %v677, %v681
        %v683 = vmul.f32 %v682, 0.7978846
        %v684 = vtanh.pop %v683
        %v685 = vadd.f32 %v684, 1.0
        %v686 = vmul.f32 %v678, %v685
        %v687 = vpack.c.bf16 %v686, %v686
        %v688 = vadd.f32 %v626, %v665
        %v689 = vadd.f32 %v688, %v675
        %v690 = vmul.f32 %v689, 0.5
        %v691 = vmul.f32 %v689, 0.044715
        %v692 = vmul.f32 %v691, %v689
        %v693 = vmul.f32 %v692, %v689
        %v694 = vadd.f32 %v689, %v693
        %v695 = vmul.f32 %v694, 0.7978846
        %v696 = vtanh.pop %v695
        %v697 = vadd.f32 %v696, 1.0
        %v698 = vmul.f32 %v690, %v697
        %v699 = vpack.c.bf16 %v698, %v698
        %v700 = vadd.f32 %v628, %v675
        %v701 = vmul.f32 %v700, 0.5
        %v702 = vmul.f32 %v700, 0.044715
        %v703 = vmul.f32 %v702, %v700
        %v704 = vmul.f32 %v703, %v700
        %v705 = vadd.f32 %v700, %v704
        %v706 = vmul.f32 %v705, 0.7978846
        %v707 = vtanh.pop %v706
        %v708 = vadd.f32 %v707, 1.0
        %v709 = vmul.f32 %v701, %v708
        %v710 = vpack.c.bf16 %v709, %v709
        %v711 = vrot.slane %v622, 1
        %v712 = vmul.f32 %v711, %v523
        %v713 = vadd.f32 %v712, %v668
        %v714 = vadd.f32 %v713, %v675
        %v715 = vmul.f32 %v714, 0.5
        %v716 = vmul.f32 %v714, 0.044715
        %v717 = vmul.f32 %v716, %v714
        %v718 = vmul.f32 %v717, %v714
        %v719 = vadd.f32 %v714, %v718
        %v720 = vmul.f32 %v719, 0.7978846
        %v721 = vtanh.pop %v720
        %v722 = vadd.f32 %v721, 1.0
        %v723 = vmul.f32 %v715, %v722
        %v724 = vpack.c.bf16 %v723, %v723
        %v725 = vld [vmem:[%s8] sm:$0x1]
        %v727 = vrot.slane %v699, 4
        %v729 = vrot.slane %v724, 4
        %v732 = vsel %vm541, %v687, %v727
        %v735 = vsel %vm541, %v710, %v729
        %v736 = vld [vmem:[#allocation7] sm:$0xff]
        %v737 = vld [vmem:[#allocation7 + $0x8] sm:$0xf]
        %v738 = vld [vmem:[#allocation7 + $0xc] sm:$0xff]
        %v739 = vld [vmem:[#allocation7 + $0x14] sm:$0xf]
        %v740 = vld [vmem:[#allocation7 + $0x18] sm:$0xff]
        %v741 = vld [vmem:[#allocation7 + $0x20] sm:$0xf]
        %v742 = vld [vmem:[#allocation7 + $0x24] sm:$0xff]
        %v743 = vld [vmem:[#allocation7 + $0x2c] sm:$0xf]
        %v752 = vunpack.c.l.b16 %v736
        %v753 = vunpack.c.h.b16 %v736
        %v754 = vunpack.c.l.b16 %v737
        %v755 = vunpack.c.l.b16 %v738
        %v756 = vunpack.c.h.b16 %v738
        %v757 = vunpack.c.l.b16 %v739
        %v758 = vunpack.c.l.b16 %v740
        %v759 = vunpack.c.h.b16 %v740
        %v760 = vunpack.c.l.b16 %v741
        %v761 = vunpack.c.l.b16 %v742
        %v762 = vunpack.c.h.b16 %v742
        %v763 = vunpack.c.l.b16 %v743
        %v764 = vpack.c.b16 %v755, %v752
        %v765 = vpack.c.b16 %v756, %v753
        %v766 = vpack.c.b16 %v757, %v754
        %v767 = vpack.c.b16 %v761, %v758
        %v768 = vpack.c.b16 %v762, %v759
        %v769 = vpack.c.b16 %v763, %v760
        %v776 = vsel %vm417, %v732, 0
        %v778 = vsel %vm417, %v735, 0
        %780 = vmatprep.subr.bf16.mxu0 %v765
        %781 = vmatpush1.bf16.msra.mxu0 %v764
        %782 = vmatprep.subr.bf16.mxu0 %v768
        %783 = vmatpush1.bf16.msra.mxu0 %v767
        %784 = vmatprep.subr.bf16.mxu0 0
        %785 = vmatpush1.bf16.msra.mxu0 0
        %786 = vmatprep.subr.bf16.mxu0 0
        %787 = vmatpush1.bf16.msra.mxu0 0
        %788 = vmatprep.subr.bf16.mxu0 0
        %789 = vmatpush1.bf16.msra.mxu0 0
        %790 = vmatprep.subr.bf16.mxu0 0
        %791 = vmatpush1.bf16.msra.mxu0 0
        %792 = vmatprep.subr.bf16.mxu0 0
        %793 = vmatpush1.bf16.msra.mxu0 0
        %794 = vmatprep.subr.bf16.mxu0 0
        %795 = vmatpush1.bf16.msra.mxu0 0
        %796 = vmatprep.subr.bf16.mxu0 0
        %797 = vmatpush1.bf16.msra.mxu0 0
        %798 = vmatprep.subr.bf16.mxu0 0
        %799 = vmatpush1.bf16.msra.mxu0 0
        %800 = vmatprep.subr.bf16.mxu0 0
        %801 = vmatpush1.bf16.msra.mxu0 0
        %802 = vmatprep.subr.bf16.mxu0 0
        %803 = vmatpush1.bf16.msra.mxu0 0
        %804 = vmatprep.subr.bf16.mxu0 0
        %805 = vmatpush1.bf16.msra.mxu0 0
        %806 = vmatprep.subr.bf16.mxu0 0
        %807 = vmatpush1.bf16.msra.mxu0 0
        %808 = vmatprep.subr.bf16.mxu0 0
        %809 = vmatpush1.bf16.msra.mxu0 0
        %810 = vmatprep.subr.bf16.mxu0 0
        %811 = vmatpush1.bf16.msra.mxu0 0
        %812 = vmatprep.mubr.bf16.mxu0 0
        %813 = vmatmul.mubr.bf16.gmra.mrb[0].mxu0 %v776
        %v814 = vpop.f32.mrb[0].mxu0
        %v815 = vadd.f32 0.0, %v814
        %v816 = vpop.f32.mrb[0].mxu0
        %v817 = vadd.f32 0.0, %v816
        %v818 = vpop.f32.mrb[0].mxu0
        %v819 = vadd.f32 0.0, %v818
        %v820 = vpop.f32.mrb[0].mxu0
        %v821 = vadd.f32 0.0, %v820
        %822 = vmatprep.mubr.bf16.mxu0 0
        %823 = vmatmul.mubr.bf16.gmra.mrb[0].mxu0 %v778
        %v824 = vpop.f32.mrb[0].mxu0
        %v825 = vadd.f32 0.0, %v824
        %v826 = vpop.f32.mrb[0].mxu0
        %v827 = vadd.f32 0.0, %v826
        %v828 = vpop.f32.mrb[0].mxu0
        %v829 = vadd.f32 0.0, %v828
        %v830 = vpop.f32.mrb[0].mxu0
        %v831 = vadd.f32 0.0, %v830
        %832 = vdwg.mxu0
        %833 = vmatprep.subr.bf16.mxu0 0
        %834 = vmatpush1.bf16.msra.mxu0 %v766
        %835 = vmatprep.subr.bf16.mxu0 0
        %836 = vmatpush1.bf16.msra.mxu0 %v769
        %837 = vmatprep.subr.bf16.mxu0 0
        %838 = vmatpush1.bf16.msra.mxu0 0
        %839 = vmatprep.subr.bf16.mxu0 0
        %840 = vmatpush1.bf16.msra.mxu0 0
        %841 = vmatprep.subr.bf16.mxu0 0
        %842 = vmatpush1.bf16.msra.mxu0 0
        %843 = vmatprep.subr.bf16.mxu0 0
        %844 = vmatpush1.bf16.msra.mxu0 0
        %845 = vmatprep.subr.bf16.mxu0 0
        %846 = vmatpush1.bf16.msra.mxu0 0
        %847 = vmatprep.subr.bf16.mxu0 0
        %848 = vmatpush1.bf16.msra.mxu0 0
        %849 = vmatprep.subr.bf16.mxu0 0
        %850 = vmatpush1.bf16.msra.mxu0 0
        %851 = vmatprep.subr.bf16.mxu0 0
        %852 = vmatpush1.bf16.msra.mxu0 0
        %853 = vmatprep.subr.bf16.mxu0 0
        %854 = vmatpush1.bf16.msra.mxu0 0
        %855 = vmatprep.subr.bf16.mxu0 0
        %856 = vmatpush1.bf16.msra.mxu0 0
        %857 = vmatprep.subr.bf16.mxu0 0
        %858 = vmatpush1.bf16.msra.mxu0 0
        %859 = vmatprep.subr.bf16.mxu0 0
        %860 = vmatpush1.bf16.msra.mxu0 0
        %861 = vmatprep.subr.bf16.mxu0 0
        %862 = vmatpush1.bf16.msra.mxu0 0
        %863 = vmatprep.subr.bf16.mxu0 0
        %864 = vmatpush1.bf16.msra.mxu0 0
        %865 = vmatprep.mubr.bf16.mxu0 0
        %866 = vmatmul.mubr.bf16.gmra.mrb[0].mxu0 %v776
        %v867 = vpop.f32.mrb[0].mxu0
        %v868 = vadd.f32 0.0, %v867
        %v869 = vpop.f32.mrb[0].mxu0
        %v870 = vpop.f32.mrb[0].mxu0
        %v871 = vadd.f32 0.0, %v870
        %v872 = vpop.f32.mrb[0].mxu0
        %873 = vmatprep.mubr.bf16.mxu0 0
        %874 = vmatmul.mubr.bf16.gmra.mrb[0].mxu0 %v778
        %v875 = vpop.f32.mrb[0].mxu0
        %v876 = vadd.f32 0.0, %v875
        %v877 = vpop.f32.mrb[0].mxu0
        %v878 = vpop.f32.mrb[0].mxu0
        %v879 = vadd.f32 0.0, %v878
        %v880 = vpop.f32.mrb[0].mxu0
        %881 = vdwg.mxu0
        %v882 = vrot.slane %v829, 7
        %884 = vset.pattern.permute.xlu0 0
        %885 = vperm.xlu0 %884, %v374
        %v886 = vpop.permute.xlu0 %885
        %v888 = vmul.f32 %v882, %v886
        %v889 = vadd.f32 %v888, %v817
        %v890 = vadd.f32 %v889, %v871
        %v892 = vlaneseq
        %v893 = vshrl.u32 %v892, 7
        %v894 = vsub.s32 0, %v893
        %v895 = vrot.slane %v725, %v894
        %v897 = vadd.f32 %v890, %v895
        %v898 = vadd.f32 %v815, %v821
        %v899 = vadd.f32 %v898, %v876
        %v900 = vadd.f32 %v899, %v895
        %v901 = vadd.f32 %v819, %v827
        %v902 = vadd.f32 %v901, %v879
        %v903 = vadd.f32 %v902, %v895
        %v904 = vadd.f32 %v825, %v831
        %v905 = vrot.slane %v868, 1
        %v906 = vmul.f32 %v905, %v523
        %v907 = vadd.f32 %v904, %v906
        %v908 = vadd.f32 %v907, %v895
        %910 = vrot.lane.b32.xlu0 %v900, 16
        %v911 = vpop.permute.xlu0 %910
        %914 = vrot.lane.b32.xlu0 %v903, 32
        %v915 = vpop.permute.xlu0 %914
        %918 = vrot.lane.b32.xlu0 %v908, 48
        %v919 = vpop.permute.xlu0 %918
        %vm921 = vcmask 130048
        %v922 = vsel %vm921, %v897, %v911
        %v923 = vsel %vm417, %v922, %v915
        %vm924 = vcmask 392192
        %v925 = vsel %vm924, %v923, %v919
        %vm926 = vcmask 523264
        %927 = vst.msk [vmem:[%s367] sm:$0xff] %vm926, %v925
        %s928 = sand.u32 %s227, 1
        %s929 = scalar_lea.sflag [#allocation4], %s928
        %s930 = sand.u32 %s227, 1
        %s931 = smul.addr %s930, 8
        %s932 = scalar_lea.vmem [#allocation8], %s931
        // Predicated region
        $region69: #{tpu_custom_call.1} parent=55 // pred_check
          %p933 = pneg %p237
        $region70: #{tpu_custom_call.1} parent=55 // pred_check_branch
          %935 = sbr.rel (%p933) target = $region72
        $region71: #{tpu_custom_call.1} parent=55 // pred_region
          %s937 = ssub.s32 128, 128
          %938 = vsyncadd %s929, %s937
          %s939 = smul.addr %s25, 128
          %s940 = scalar_lea.hbm %s9, %s939
          %s942 = sshll.u32 %s932, 4
          %s943 = int_to_ptr.vmem [resolvable:$true] %s942
          %945 = dma.vmem_to_hbm [thread:$0]  %s943, 128, %s940, %s929
        $region72: #{tpu_custom_call.1} parent=55 // pred_fallthru
          _
      $region56: #{tpu_custom_call.1} parent=5 // pred_fallthru
        _
      %p946 = scmp.le.s32.totalorder 2, %s20
      // Predicated region
      $region73: #{tpu_custom_call.1} parent=5 // pred_check
        %p947 = pneg %p946
      $region74: #{tpu_custom_call.1} parent=5 // pred_check_branch
        %949 = sbr.rel (%p947) target = $region76
      $region75: #{tpu_custom_call.1} parent=5 // pred_region
        %s950 = ssub.s32 %s20, 2
        // Predicated region
        $region77: #{tpu_custom_call.1} parent=75 // pred_check
          %p951 = pneg %p243
        $region78: #{tpu_custom_call.1} parent=75 // pred_check_branch
          %953 = sbr.rel (%p951) target = $region80
        $region79: #{tpu_custom_call.1} parent=75 // pred_region
          %s954 = sand.u32 %s228, 1
          %s955 = scalar_lea.sflag [#allocation4], %s954
          %s956 = sand.u32 %s228, 1
          %s957 = smul.addr %s956, 8
          %s958 = scalar_lea.vmem [#allocation8], %s957
          %959 = dma.done %s955, 128
        $region80: #{tpu_custom_call.1} parent=75 // pred_fallthru
          _
      $region76: #{tpu_custom_call.1} parent=5 // pred_fallthru
        _
    $region6: #{tpu_custom_call.1} parent=1 // loop_footer
      %s24 = sadd.s32 1, %s20
    $region7: #{tpu_custom_call.1} parent=1 // loop_footer_branch
      %19 = sbr.rel target = $region3
    $region8: #{tpu_custom_call.1} parent=1 // loop_exit
      _
    %960 = vsyncpa [#allocation3], 1
    %s961 = scalar_lea.sflag [#allocation3], 1
    %962 = vsyncpa %s961, 1
    %963 = vsyncpa [#allocation6], 1
    %964 = vsyncpa [#allocation4], 1
    %s965 = scalar_lea.sflag [#allocation4], 1
    %966 = vsyncpa %s965, 1

</llo_original>
